<compile_context>
chip_gen: v7x
topology: tpu7x:2x2x1
jax: 0.10.0
libtpu: 0.0.40
codegen_flags: <defaults>
</compile_context>

<pallas_src>
import functools

import jax
import jax.numpy as jnp
from jax.experimental import pallas as pl
from jax.experimental.pallas import tpu as pltpu


def _round_up(x, m):
    return ((x + m - 1) // m) * m


# ----------------------------- Pallas kernel: add tem1 + dilated (1,k) temporal conv --------
def _temconv_kernel(x_ref, tem_ref, w_ref, b_ref, o_ref, xp_ref, *, k, d, pad, t_out):
    tm, t, cin = x_ref.shape
    cout_p = o_ref.shape[-1]

    # input + tem1 (broadcast over the M tile) in f32 (v5e VPU has no bf16), then cast to
    # the MXU compute dtype when writing into the padded scratch.
    xa = x_ref[...].astype(jnp.float32) + tem_ref[...][None, :, :]

    # Zero the left/right time padding (every step: scratch is per-core, see header note).
    if pad > 0:
        zeros = jnp.zeros((tm, pad, cin), xp_ref.dtype)
        xp_ref[:, 0:pad, :] = zeros
        xp_ref[:, pad + t:pad + t + pad, :] = zeros
    xp_ref[:, pad:pad + t, :] = xa.astype(xp_ref.dtype)

    # k accumulating GEMMs over shifted time windows read straight from the scratch.
    # Each LHS is (tm*t_out, cin); each weight lane-slice is 128-aligned. Largest live
    # intermediate is the (tm*t_out, cout_p) f32 accumulator.
    def tap(j):
        lhs = xp_ref[:, j * d:j * d + t_out, :].reshape(tm * t_out, cin)
        return jnp.dot(lhs, w_ref[:, j * cout_p:(j + 1) * cout_p],
                       preferred_element_type=jnp.float32)

    acc = tap(0)
    for j in range(1, k):
        acc = acc + tap(j)

    o_ref[...] = (acc + b_ref[...]).astype(o_ref.dtype)


# ----------------------------- VMEM sizing (physical tile sizes, per-generation budget) -----
def _phys_bytes(shape, itemsize):
    """Bytes a buffer really occupies in VMEM: last dim padded to 128 lanes, second-to-last
    to the dtype's sublane packing (8 for f32, 16 for bf16)."""
    s = list(shape)
    s[-1] = _round_up(s[-1], 128)
    if len(s) >= 2:
        s[-2] = _round_up(s[-2], max(8, 32 // itemsize))
    n = itemsize
    for dim in s:
        n *= dim
    return n


def _vmem_budgets():
    """(tile budget, vmem_limit_bytes) per TPU generation."""
    cap = None
    try:
        info = pltpu.get_tpu_info()
        for attr in ("vmem_capacity_bytes", "vmem_bytes", "vmem_size_bytes"):
            if hasattr(info, attr):
                cap = int(getattr(info, attr))
                break
    except Exception:
        cap = None
    if cap is not None and cap >= 100 * 1024 * 1024:        # v5e / v6e: 128 MiB physical
        return 48 * 1024 * 1024, 96 * 1024 * 1024
    return 20 * 1024 * 1024, 40 * 1024 * 1024               # v7x (64 MiB / TC) or unknown


def _choose_tile_m(m, t, cin, t_out, k, cout_p, pad, cbytes, budget):
    """Largest multiple-of-8 tile fitting the physical-VMEM budget; prefer grid >= 2."""

    def est_bytes(tm):
        x_blk = 2 * _phys_bytes((tm, t, cin), cbytes)            # input tile, double-buffered
        tem_blk = 2 * _phys_bytes((t, cin), 4)
        w_blk = 2 * _phys_bytes((cin, k * cout_p), cbytes)
        b_blk = 2 * _phys_bytes((1, cout_p), 4)
        o_blk = 2 * _phys_bytes((tm * t_out, cout_p), 4)         # output tile, double-buffered
        xp = _phys_bytes((tm, t + 2 * pad, cin), cbytes)         # padded-time scratch
        xa = _phys_bytes((tm, t, cin), 4)                        # f32 add result (live value)
        acc = _phys_bytes((tm * t_out, cout_p), 4)               # f32 accumulator value
        lhs_cp = 2 * _phys_bytes((tm * t_out, cin), cbytes)      # shifted-window copies
        part = _phys_bytes((tm * t_out, cout_p), 4)              # one un-accumulated tap
        return (x_blk + tem_blk + w_blk + b_blk + o_blk + xp + xa + acc + lhs_cp + part)

    m8 = _round_up(m, 8)
    cands = sorted({8, 16, 24, 32, 48, 64, 96, 128, 192, 256, 384, 512, 768, 1024,
                    m8, _round_up(pl.cdiv(m, 2), 8)}, reverse=True)
    cands = [c for c in cands if c <= m8]
    fit = [c for c in cands if est_bytes(c) <= budget]
    if not fit:
        return 8
    multi = [c for c in fit if pl.cdiv(m, c) >= 2]               # >=2 grid steps (megacore)
    return multi[0] if multi else fit[0]


# ----------------------------- pallas_call wrapper -------------------------------------------
def _temconv_pallas(x_in, tem1_cl, w_all, bias_p, *, k, d, pad, t_out, tile_m, vmem_limit):
    m_pad, t, cin = x_in.shape
    cout_p = bias_p.shape[-1]
    assert m_pad % tile_m == 0
    grid = m_pad // tile_m

    kernel = functools.partial(_temconv_kernel, k=k, d=d, pad=pad, t_out=t_out)
    return pl.pallas_call(
        kernel,
        out_shape=jax.ShapeDtypeStruct((m_pad * t_out, cout_p), jnp.float32),
        grid_spec=pltpu.PrefetchScalarGridSpec(
            num_scalar_prefetch=0,
            grid=(grid,),
            in_specs=[
                pl.BlockSpec((tile_m, t, cin), lambda i: (i, 0, 0)),     # x tile (compute dt)
                pl.BlockSpec((t, cin), lambda i: (0, 0)),                # tem1 (f32)
                pl.BlockSpec((cin, k * cout_p), lambda i: (0, 0)),       # stacked taps
                pl.BlockSpec((1, cout_p), lambda i: (0, 0)),             # bias (f32)
            ],
            out_specs=pl.BlockSpec((tile_m * t_out, cout_p), lambda i: (i, 0)),
            scratch_shapes=[pltpu.VMEM((tile_m, t + 2 * pad, cin), x_in.dtype)],
        ),
        compiler_params=pltpu.CompilerParams(
            dimension_semantics=("parallel",),
            vmem_limit_bytes=vmem_limit,
        ),
    )(x_in, tem1_cl, w_all, bias_p)


# ----------------------------- Channels-last core (no relayout passes) -----------------------
def temconv_channels_last(x_cl, params, *, k, d, compute_dtype=jnp.bfloat16):
    m, t, c_in = x_cl.shape
    seg = params["w1"].shape[1]
    assert seg == t, "temporal length must equal seg"
    pad = (k + (d - 1) * (d - 1) - 1) // 2        # matches the PyTorch module's formula
    t_out = t + 2 * pad - d * (k - 1)
    assert t_out > 0
    cout = params["conv_w"].shape[0]
    cout_p = _round_up(cout, 128)                 # lane-dense output channels

    # tem is the identity one-hot => conv1x1(seg,64)(tem) == W1 + b1; the whole temporal
    # embedding is a tiny plain-JAX computation (no kernel launch, no identity matmul).
    h = jnp.maximum(params["w1"] + params["b1"][:, None], 0.0)               # (64, seg)
    tem1 = jnp.maximum(params["w2"] @ h + params["b2"][:, None], 0.0)        # (c_in, seg)
    tem1_cl = tem1.T.astype(jnp.float32)                                     # (T, Cin)

    # Conv taps (Cout, Cin, 1, k) -> (Cin, k*Cout_p): w_all[c, j*Cout_p + o] = W[o, c, 0, j].
    w_k = jnp.transpose(params["conv_w"][:, :, 0, :], (1, 2, 0))             # (Cin, k, Cout)
    w_k = jnp.pad(w_k, ((0, 0), (0, 0), (0, cout_p - cout)))
    w_all = w_k.reshape(c_in, k * cout_p).astype(compute_dtype)
    bias_p = jnp.pad(params["conv_b"], (0, cout_p - cout)).astype(jnp.float32)[None, :]

    budget, vmem_limit = _vmem_budgets()
    cbytes = jnp.dtype(compute_dtype).itemsize
    tile_m = _choose_tile_m(m, t, c_in, t_out, k, cout_p, pad, cbytes, budget)
    grid = pl.cdiv(m, tile_m)
    m_pad = grid * tile_m

    x_in = x_cl.astype(compute_dtype)
    if m_pad != m:                                 # ragged tail: pad M, crop after
        x_in = jnp.pad(x_in, ((0, m_pad - m), (0, 0), (0, 0)))

    out2d = _temconv_pallas(x_in, tem1_cl, w_all, bias_p, k=k, d=d, pad=pad,
                            t_out=t_out, tile_m=tile_m, vmem_limit=vmem_limit)
    # Row-major (M_pad*T_out, Cout_p) -> (M_pad, T_out, Cout_p) is free; ideally a channels-
    # last consumer would keep the lane-padded channels and defer this crop.
    return out2d.reshape(m_pad, t_out, cout_p)[:m, :, :cout]


# ----------------------------- NCHW adapter (PyTorch-module layout, for the self-test) -------
def temconv_forward(x_nchw, params, *, k, d, compute_dtype=jnp.bfloat16):
    """NCHW adapter matching the PyTorch module. In a channels-last model, call
    temconv_channels_last directly and both relayout transposes below disappear."""
    n, c_in, v, t = x_nchw.shape
    x_cl = jnp.transpose(x_nchw, (0, 2, 3, 1)).reshape(n * v, t, c_in)
    out_cl = temconv_channels_last(x_cl, params, k=k, d=d, compute_dtype=compute_dtype)
    t_out, cout = out_cl.shape[1], out_cl.shape[2]
    out = out_cl.reshape(n, v, t_out, cout)
    return jnp.transpose(out, (0, 3, 1, 2))                                  # (N, Cout, V, T')


# ----------------------------- Pure-JAX reference (keeps the explicit one-hot path) ----------
def temconv_reference(x_nchw, params, *, k, d):
    n, c_in, v, t = x_nchw.shape
    seg = t
    pad = (k + (d - 1) * (d - 1) - 1) // 2
    tem = jnp.eye(seg, dtype=jnp.float32)                                    # identity one-hot
    h = jnp.maximum(params["w1"] @ tem + params["b1"][:, None], 0.0)         # (64, seg)
    t2 = jnp.maximum(params["w2"] @ h + params["b2"][:, None], 0.0)          # (dim, seg)
    tem1 = t2[None, :, None, :]                                              # (1, dim, 1, seg)
    inp = x_nchw + tem1
    out = jax.lax.conv_general_dilated(
        inp, params["conv_w"], window_strides=(1, 1),
        padding=((0, 0), (pad, pad)), rhs_dilation=(1, d),
        dimension_numbers=("NCHW", "OIHW", "NCHW"))
    return out + params["conv_b"][None, :, None, None]


# ----------------------------- Main -----------------------------------------------------------
if __name__ == "__main__":
    # Small shapes consistent with the module: in_c == dim (input channels must match tem1).
    N, V, SEG = 2, 8, 8          # batch, joints, temporal length (seg)
    DIM = 32                     # in_c == dim
    OUT_C = 16
    K, D = 3, 1
    HID = 64                     # embed hidden size fixed by the module

    key = jax.random.PRNGKey(0)
    k_x, k_w1, k_b1, k_w2, k_b2, k_cw, k_cb = jax.random.split(key, 7)

    params = {
        "w1": 0.1 * jax.random.normal(k_w1, (HID, SEG), jnp.float32),        # cnn1x1(seg, 64)
        "b1": 0.1 * jax.random.normal(k_b1, (HID,), jnp.float32),
        "w2": 0.1 * jax.random.normal(k_w2, (DIM, HID), jnp.float32),        # cnn1x1(64, dim)
        "b2": 0.1 * jax.random.normal(k_b2, (DIM,), jnp.float32),
        "conv_w": 0.1 * jax.random.normal(k_cw, (OUT_C, DIM, 1, K), jnp.float32),
        "conv_b": 0.1 * jax.random.normal(k_cb, (OUT_C,), jnp.float32),
    }
    x = jax.random.normal(k_x, (N, DIM, V, SEG), jnp.float32)                # NCHW: (N, C, V, T)

    ref = jax.block_until_ready(temconv_reference(x, params, k=K, d=D))

    # Exactness check: f32 compute path must match the XLA reference tightly.
    fwd_f32 = jax.jit(functools.partial(temconv_forward, k=K, d=D, compute_dtype=jnp.float32))
    out_f32 = jax.block_until_ready(fwd_f32(x, params))
    assert out_f32.shape == ref.shape, (out_f32.shape, ref.shape)
    err_f32 = float(jnp.max(jnp.abs(out_f32 - ref)))
    assert jnp.allclose(out_f32, ref, atol=1e-4, rtol=1e-4), err_f32

    # Default (perf) path: bf16 operands on the MXU, f32 accumulation / adds.
    fwd = jax.jit(functools.partial(temconv_forward, k=K, d=D))
    out = jax.block_until_ready(fwd(x, params))
    assert out.shape == ref.shape, (out.shape, ref.shape)
    err_bf16 = float(jnp.max(jnp.abs(out - ref)))
    assert jnp.allclose(out, ref, atol=5e-2, rtol=5e-2), err_bf16

    print("KERNEL_OK")
</pallas_src>

<mosaic_0001>
module attributes {stable_mosaic.version = 11 : i64} {
  func.func @_temconv_kernel(%arg0: i32, %arg1: memref<8x8x32xf32, #tpu.memory_space<vmem>>, %arg2: memref<8x32xf32, #tpu.memory_space<vmem>>, %arg3: memref<32x384xf32, #tpu.memory_space<vmem>>, %arg4: memref<1x128xf32, #tpu.memory_space<vmem>>, %arg5: memref<64x128xf32, #tpu.memory_space<vmem>>, %arg6: memref<8x10x32xf32, #tpu.memory_space<vmem>>) attributes {dimension_semantics = [#tpu.dimension_semantics<parallel>], iteration_bounds = array<i64: 2>, scalar_prefetch = 0 : i64, scratch_operands = 1 : i64, tpu.core_type = #tpu.core_type<tc>, window_params = [{transform_indices = @transform_0, window_bounds = array<i64: 8, 8, 32>}, {pipeline_mode = #tpu.pipeline_mode<synchronous>, transform_indices = @transform_1, window_bounds = array<i64: 8, 32>}, {pipeline_mode = #tpu.pipeline_mode<synchronous>, transform_indices = @transform_2, window_bounds = array<i64: 32, 384>}, {pipeline_mode = #tpu.pipeline_mode<synchronous>, transform_indices = @transform_3, window_bounds = array<i64: 1, 128>}, {transform_indices = @transform_4, window_bounds = array<i64: 64, 128>}]} {
    %c0 = arith.constant 0 : index
    %c0_0 = arith.constant 0 : index
    %c0_1 = arith.constant 0 : index
    %0 = vector.load %arg1[%c0, %c0_0, %c0_1] : memref<8x8x32xf32, #tpu.memory_space<vmem>>, vector<8x8x32xf32>
    %c0_2 = arith.constant 0 : index
    %c0_3 = arith.constant 0 : index
    %1 = vector.load %arg2[%c0_2, %c0_3] : memref<8x32xf32, #tpu.memory_space<vmem>>, vector<8x32xf32>
    %2 = vector.shape_cast %1 : vector<8x32xf32> to vector<1x8x32xf32>
    %3 = vector.broadcast %2 : vector<1x8x32xf32> to vector<8x8x32xf32>
    %4 = arith.addf %0, %3 : vector<8x8x32xf32>
    %cst = arith.constant 0.000000e+00 : f32
    %5 = vector.broadcast %cst : f32 to vector<8x1x32xf32>
    %c0_4 = arith.constant 0 : index
    %c0_5 = arith.constant 0 : index
    %c0_6 = arith.constant 0 : index
    %6 = vector.load %arg6[%c0_4, %c0_5, %c0_6] : memref<8x10x32xf32, #tpu.memory_space<vmem>>, vector<8x1x32xf32>
    tpu.vector_store %arg6[%c0_4, %c0_5, %c0_6], %5 {strides = array<i32>} : memref<8x10x32xf32, #tpu.memory_space<vmem>>, vector<8x1x32xf32>,
    %c0_7 = arith.constant 0 : index
    %c9 = arith.constant 9 : index
    %c0_8 = arith.constant 0 : index
    %7 = vector.load %arg6[%c0_7, %c9, %c0_8] : memref<8x10x32xf32, #tpu.memory_space<vmem>>, vector<8x1x32xf32>
    tpu.vector_store %arg6[%c0_7, %c9, %c0_8], %5 {strides = array<i32>} : memref<8x10x32xf32, #tpu.memory_space<vmem>>, vector<8x1x32xf32>,
    %c0_9 = arith.constant 0 : index
    %c1 = arith.constant 1 : index
    %c0_10 = arith.constant 0 : index
    %8 = vector.load %arg6[%c0_9, %c1, %c0_10] : memref<8x10x32xf32, #tpu.memory_space<vmem>>, vector<8x8x32xf32>
    tpu.vector_store %arg6[%c0_9, %c1, %c0_10], %4 {strides = array<i32>} : memref<8x10x32xf32, #tpu.memory_space<vmem>>, vector<8x8x32xf32>,
    %c0_11 = arith.constant 0 : index
    %c0_12 = arith.constant 0 : index
    %c0_13 = arith.constant 0 : index
    %9 = vector.load %arg6[%c0_11, %c0_12, %c0_13] : memref<8x10x32xf32, #tpu.memory_space<vmem>>, vector<8x8x32xf32>
    %10 = vector.shape_cast %9 : vector<8x8x32xf32> to vector<64x32xf32>
    %c0_14 = arith.constant 0 : index
    %c0_15 = arith.constant 0 : index
    %11 = vector.load %arg3[%c0_14, %c0_15] : memref<32x384xf32, #tpu.memory_space<vmem>>, vector<32x128xf32>
    %cst_16 = arith.constant dense<0.000000e+00> : vector<64x128xf32>
    %12 = tpu.matmul %10, %11, %cst_16 {dimension_numbers = #tpu.dot_dimension_numbers<[1], [0], [0], [1], [0, 0, 1, 1], [], []>} : vector<64x32xf32>, vector<32x128xf32>, vector<64x128xf32> -> vector<64x128xf32>
    %c0_17 = arith.constant 0 : index
    %c1_18 = arith.constant 1 : index
    %c0_19 = arith.constant 0 : index
    %13 = vector.load %arg6[%c0_17, %c1_18, %c0_19] : memref<8x10x32xf32, #tpu.memory_space<vmem>>, vector<8x8x32xf32>
    %14 = vector.shape_cast %13 : vector<8x8x32xf32> to vector<64x32xf32>
    %c0_20 = arith.constant 0 : index
    %c128 = arith.constant 128 : index
    %15 = vector.load %arg3[%c0_20, %c128] : memref<32x384xf32, #tpu.memory_space<vmem>>, vector<32x128xf32>
    %cst_21 = arith.constant dense<0.000000e+00> : vector<64x128xf32>
    %16 = tpu.matmul %14, %15, %cst_21 {dimension_numbers = #tpu.dot_dimension_numbers<[1], [0], [0], [1], [0, 0, 1, 1], [], []>} : vector<64x32xf32>, vector<32x128xf32>, vector<64x128xf32> -> vector<64x128xf32>
    %17 = arith.addf %12, %16 : vector<64x128xf32>
    %c0_22 = arith.constant 0 : index
    %c2 = arith.constant 2 : index
    %c0_23 = arith.constant 0 : index
    %18 = vector.load %arg6[%c0_22, %c2, %c0_23] : memref<8x10x32xf32, #tpu.memory_space<vmem>>, vector<8x8x32xf32>
    %19 = vector.shape_cast %18 : vector<8x8x32xf32> to vector<64x32xf32>
    %c0_24 = arith.constant 0 : index
    %c256 = arith.constant 256 : index
    %20 = vector.load %arg3[%c0_24, %c256] : memref<32x384xf32, #tpu.memory_space<vmem>>, vector<32x128xf32>
    %cst_25 = arith.constant dense<0.000000e+00> : vector<64x128xf32>
    %21 = tpu.matmul %19, %20, %cst_25 {dimension_numbers = #tpu.dot_dimension_numbers<[1], [0], [0], [1], [0, 0, 1, 1], [], []>} : vector<64x32xf32>, vector<32x128xf32>, vector<64x128xf32> -> vector<64x128xf32>
    %22 = arith.addf %17, %21 : vector<64x128xf32>
    %c0_26 = arith.constant 0 : index
    %c0_27 = arith.constant 0 : index
    %23 = vector.load %arg4[%c0_26, %c0_27] : memref<1x128xf32, #tpu.memory_space<vmem>>, vector<1x128xf32>
    %24 = vector.broadcast %23 : vector<1x128xf32> to vector<64x128xf32>
    %25 = arith.addf %22, %24 : vector<64x128xf32>
    %c0_28 = arith.constant 0 : index
    %c0_29 = arith.constant 0 : index
    %26 = vector.load %arg5[%c0_28, %c0_29] : memref<64x128xf32, #tpu.memory_space<vmem>>, vector<64x128xf32>
    tpu.vector_store %arg5[%c0_28, %c0_29], %25 {strides = array<i32>} : memref<64x128xf32, #tpu.memory_space<vmem>>, vector<64x128xf32>,
    return
  }
  func.func @transform_0(%arg0: i32) -> (i32, i32, i32) {
    %c0_i32 = arith.constant 0 : i32
    %c0_i32_0 = arith.constant 0 : i32
    %c0_i32_1 = arith.constant 0 : i32
    return %arg0, %c0_i32, %c0_i32_0 : i32, i32, i32
  }
  func.func @transform_1(%arg0: i32) -> (i32, i32) {
    %c0_i32 = arith.constant 0 : i32
    %c0_i32_0 = arith.constant 0 : i32
    %c0_i32_1 = arith.constant 0 : i32
    return %c0_i32, %c0_i32_0 : i32, i32
  }
  func.func @transform_2(%arg0: i32) -> (i32, i32) {
    %c0_i32 = arith.constant 0 : i32
    %c0_i32_0 = arith.constant 0 : i32
    %c0_i32_1 = arith.constant 0 : i32
    return %c0_i32, %c0_i32_0 : i32, i32
  }
  func.func @transform_3(%arg0: i32) -> (i32, i32) {
    %c0_i32 = arith.constant 0 : i32
    %c0_i32_0 = arith.constant 0 : i32
    %c0_i32_1 = arith.constant 0 : i32
    return %c0_i32, %c0_i32_0 : i32, i32
  }
  func.func @transform_4(%arg0: i32) -> (i32, i32) {
    %c0_i32 = arith.constant 0 : i32
    %c0_i32_0 = arith.constant 0 : i32
    return %arg0, %c0_i32 : i32, i32
  }
}

</mosaic_0001>

<llo_original>
// kernel: temconv_forward.1
$region0: #{temconv_forward.1}
  #allocation0 [shape = 'u32[]', space=smem, size = 0x4, offset = 0x4, fixed_abs, tag = 'smem constant byte address 0x4 - core index']
  #allocation1 [shape = 'u32[144,128]{1,0:T(1,128)}', space=vmem, size = 0x12000, scoped, tag = 'internal scratch']
  #allocation2 [shape = 'f32[8,10,32]{2,1,0:T(8,128)}', space=vmem, size = 0x10000, scoped, tag = 'scratch operand']
  %s0 = inlined_call_operand.vmem [shape: f32[16,8,32], index: 0, kind: input, shape index: {}]
  %s1 = inlined_call_operand.vmem [shape: f32[8,32], index: 1, kind: input, shape index: {}]
  %s2 = inlined_call_operand.vmem [shape: f32[32,384], index: 2, kind: input, shape index: {}]
  %s3 = inlined_call_operand.vmem [shape: f32[1,128], index: 3, kind: input, shape index: {}]
  %s4 = inlined_call_operand.hbm [shape: f32[128,128], index: 4, kind: output, shape index: {}]
  %s5 = sld [smem:[#allocation0]]
  $region49: #{temconv_forward.1} parent=0
    _
  %s7 = ssub.s32 1, %s5
  %s8 = scalar_select 0, %s7, %s5
  $region1: #{temconv_forward.1} parent=0
    #allocation3 [shape = 'u8[65536]{0}', space=vmem, size = 0x10000, scoped, tag = 'output window, operand 0']
    #allocation4 [shape = 's32[2]{0}', space=sflag, size = 0x8, scoped, tag = 'scoped memory for temconv_forward.1']
    %9 = vsyncpa [#allocation4], 0
    %s10 = scalar_lea.sflag [#allocation4], 1
    %11 = vsyncpa %s10, 0
    loop: start=0, step=1, limit=4
    $region2: #{temconv_forward.1} parent=1 // loop_pre_header
      _
    $region3: #{temconv_forward.1} parent=1 // loop_header
      %s13 = sphi 0, %s17
      %p14 = scmp.ge.s32.totalorder %s13, 4
      %s23 = sphi 0, %s25
      %s26 = sphi 0, %s23
      %s27 = sphi 0, %s26
      %s43 = sphi 0, %s27
      %s47 = sphi 0, %s47
      %s49 = sphi 0, %s47
      %s50 = sphi 0, %s49
      %s64 = sphi 0, %s50
      %s68 = sphi 0, %s68
      %s70 = sphi 0, %s68
      %s71 = sphi 0, %s70
      %s85 = sphi 0, %s71
      %s89 = sphi 0, %s89
      %s91 = sphi 0, %s89
      %s92 = sphi 0, %s91
      %s106 = sphi 0, %s92
      %s112 = sphi 0, %s114
      %s115 = sphi 0, %s112
      %s116 = sphi 0, %s115
      %s132 = sphi 0, %s116
    $region4: #{temconv_forward.1} parent=1 // loop_header_branch
      %16 = sbr.rel (%p14) target = $region8
    $region5: #{temconv_forward.1} parent=1 // loop_body
      %s18 = ssub.s32 %s13, 1
      %s19 = ssub.s32 %s13, 2
      %s20 = sadd.s32 %s13, 1
      %s21 = ssub.s32 %s13, %s20
      %p22 = scmp.eq.s32.totalorder %s21, 0
      %s24 = sadd.s32 %s23, 1
      %s25 = scalar_select %p22, %s23, %s24
      %p28 = pneg %p22
      %p29 = scmp.eq.s32.totalorder %s13, 1
      %p30 = por %p28, %p29
      %p31 = scmp.ne.s32.totalorder %s23, %s26
      %p32 = scmp.eq.s32.totalorder %s13, 0
      %p33 = por %p31, %p32
      %p34 = scmp.ne.s32.totalorder %s23, %s26
      %p35 = scmp.eq.s32.totalorder %s18, 1
      %p36 = por %p34, %p35
      %p37 = scmp.ne.s32.totalorder %s26, %s27
      %p38 = scmp.eq.s32.totalorder %s18, 0
      %p39 = por %p37, %p38
      %p40 = scmp.ne.s32.totalorder %s26, %s27
      %p41 = scmp.eq.s32.totalorder %s19, 1
      %p42 = por %p40, %p41
      %p44 = scmp.ne.s32.totalorder %s27, %s43
      %p45 = scmp.eq.s32.totalorder %s19, 0
      %p46 = por %p44, %p45
      %s48 = sadd.s32 %s47, 1
      %p51 = scmp.eq.s32.totalorder %s13, 1
      %p52 = scmp.ne.s32.totalorder %s47, %s49
      %p53 = scmp.eq.s32.totalorder %s13, 0
      %p54 = por %p52, %p53
      %p55 = scmp.ne.s32.totalorder %s47, %s49
      %p56 = scmp.eq.s32.totalorder %s18, 1
      %p57 = por %p55, %p56
      %p58 = scmp.ne.s32.totalorder %s49, %s50
      %p59 = scmp.eq.s32.totalorder %s18, 0
      %p60 = por %p58, %p59
      %p61 = scmp.ne.s32.totalorder %s49, %s50
      %p62 = scmp.eq.s32.totalorder %s19, 1
      %p63 = por %p61, %p62
      %p65 = scmp.ne.s32.totalorder %s50, %s64
      %p66 = scmp.eq.s32.totalorder %s19, 0
      %p67 = por %p65, %p66
      %s69 = sadd.s32 %s68, 1
      %p72 = scmp.eq.s32.totalorder %s13, 1
      %p73 = scmp.ne.s32.totalorder %s68, %s70
      %p74 = scmp.eq.s32.totalorder %s13, 0
      %p75 = por %p73, %p74
      %p76 = scmp.ne.s32.totalorder %s68, %s70
      %p77 = scmp.eq.s32.totalorder %s18, 1
      %p78 = por %p76, %p77
      %p79 = scmp.ne.s32.totalorder %s70, %s71
      %p80 = scmp.eq.s32.totalorder %s18, 0
      %p81 = por %p79, %p80
      %p82 = scmp.ne.s32.totalorder %s70, %s71
      %p83 = scmp.eq.s32.totalorder %s19, 1
      %p84 = por %p82, %p83
      %p86 = scmp.ne.s32.totalorder %s71, %s85
      %p87 = scmp.eq.s32.totalorder %s19, 0
      %p88 = por %p86, %p87
      %s90 = sadd.s32 %s89, 1
      %p93 = scmp.eq.s32.totalorder %s13, 1
      %p94 = scmp.ne.s32.totalorder %s89, %s91
      %p95 = scmp.eq.s32.totalorder %s13, 0
      %p96 = por %p94, %p95
      %p97 = scmp.ne.s32.totalorder %s89, %s91
      %p98 = scmp.eq.s32.totalorder %s18, 1
      %p99 = por %p97, %p98
      %p100 = scmp.ne.s32.totalorder %s91, %s92
      %p101 = scmp.eq.s32.totalorder %s18, 0
      %p102 = por %p100, %p101
      %p103 = scmp.ne.s32.totalorder %s91, %s92
      %p104 = scmp.eq.s32.totalorder %s19, 1
      %p105 = por %p103, %p104
      %p107 = scmp.ne.s32.totalorder %s92, %s106
      %p108 = scmp.eq.s32.totalorder %s19, 0
      %p109 = por %p107, %p108
      %s110 = ssub.s32 %s13, %s20
      %p111 = scmp.eq.s32.totalorder %s110, 0
      %s113 = sadd.s32 %s112, 1
      %s114 = scalar_select %p111, %s112, %s113
      %p117 = pneg %p111
      %p118 = scmp.eq.s32.totalorder %s13, 1
      %p119 = por %p117, %p118
      %p120 = scmp.ne.s32.totalorder %s112, %s115
      %p121 = scmp.eq.s32.totalorder %s13, 0
      %p122 = por %p120, %p121
      %p123 = scmp.ne.s32.totalorder %s112, %s115
      %p124 = scmp.eq.s32.totalorder %s18, 1
      %p125 = por %p123, %p124
      %p126 = scmp.ne.s32.totalorder %s115, %s116
      %p127 = scmp.eq.s32.totalorder %s18, 0
      %p128 = por %p126, %p127
      %p129 = scmp.ne.s32.totalorder %s115, %s116
      %p130 = scmp.eq.s32.totalorder %s19, 1
      %p131 = por %p129, %p130
      %p133 = scmp.ne.s32.totalorder %s116, %s132
      %p134 = scmp.eq.s32.totalorder %s19, 0
      %p135 = por %p133, %p134
      %p136 = scmp.le.s32.totalorder 1, %s13
      %p137 = scmp.lt.s32.totalorder %s13, 3
      %p138 = pnand %p136, %p137
      %p139 = pneg %p138
      // Predicated region
      $region9: #{temconv_forward.1} parent=5 // pred_check
        _
      $region10: #{temconv_forward.1} parent=5 // pred_check_branch
        %141 = sbr.rel (%p138) target = $region12
      $region11: #{temconv_forward.1} parent=5 // pred_region
        %s142 = ssub.s32 %s13, 1
        // Predicated region
        $region13: #{temconv_forward.1} parent=11 // pred_check
          %p143 = pneg %p60
        $region14: #{temconv_forward.1} parent=11 // pred_check_branch
          %145 = sbr.rel (%p143) target = $region16
        $region15: #{temconv_forward.1} parent=11 // pred_region
          _
        $region16: #{temconv_forward.1} parent=11 // pred_fallthru
          _
        // Predicated region
        $region17: #{temconv_forward.1} parent=11 // pred_check
          %p146 = pneg %p81
        $region18: #{temconv_forward.1} parent=11 // pred_check_branch
          %148 = sbr.rel (%p146) target = $region20
        $region19: #{temconv_forward.1} parent=11 // pred_region
          _
        $region20: #{temconv_forward.1} parent=11 // pred_fallthru
          _
        // Predicated region
        $region21: #{temconv_forward.1} parent=11 // pred_check
          %p149 = pneg %p102
        $region22: #{temconv_forward.1} parent=11 // pred_check_branch
          %151 = sbr.rel (%p149) target = $region24
        $region23: #{temconv_forward.1} parent=11 // pred_region
          _
        $region24: #{temconv_forward.1} parent=11 // pred_fallthru
          _
      $region12: #{temconv_forward.1} parent=5 // pred_fallthru
        _
      %p152 = scmp.lt.s32.totalorder %s13, 2
      // Predicated region
      $region25: #{temconv_forward.1} parent=5 // pred_check
        %p153 = pneg %p152
      $region26: #{temconv_forward.1} parent=5 // pred_check_branch
        %155 = sbr.rel (%p153) target = $region28
      $region27: #{temconv_forward.1} parent=5 // pred_region
        // Predicated region
        $region29: #{temconv_forward.1} parent=27 // pred_check
          %p156 = pneg %p33
        $region30: #{temconv_forward.1} parent=27 // pred_check_branch
          %158 = sbr.rel (%p156) target = $region32
        $region31: #{temconv_forward.1} parent=27 // pred_region
          %s159 = smul.u32 8, %s13
          %p160 = scmp.lt.s32.totalorder %s159, 15
          %s161 = scalar_select %p160, %s159, 15
          %s162 = smul.addr %s161, 8
          %s163 = scalar_lea.vmem %s0, %s162
          %s164 = smul.u32 8, %s13
        $region32: #{temconv_forward.1} parent=27 // pred_fallthru
          _
      $region28: #{temconv_forward.1} parent=5 // pred_fallthru
        _
      %p165 = scmp.le.s32.totalorder 1, %s13
      %p166 = scmp.lt.s32.totalorder %s13, 3
      %p167 = pnand %p165, %p166
      %p168 = pneg %p167
      // Predicated region
      $region33: #{temconv_forward.1} parent=5 // pred_check
        _
      $region34: #{temconv_forward.1} parent=5 // pred_check_branch
        %170 = sbr.rel (%p167) target = $region36
      $region35: #{temconv_forward.1} parent=5 // pred_region
        %s171 = ssub.s32 %s13, 1
        %s172 = smul.u32 8, %s18
        %p173 = scmp.lt.s32.totalorder %s172, 15
        %s174 = scalar_select %p173, %s172, 15
        %s175 = smul.addr %s174, 8
        %s176 = scalar_lea.vmem %s0, %s175
        %p177 = pneg %p39
        %p178 = pneg %p36
        %p179 = pneg %p60
        %p180 = pneg %p57
        %p181 = pneg %p81
        %p182 = pneg %p78
        %p183 = pneg %p102
        %p184 = pneg %p99
        %p185 = pneg %p128
        %p186 = pneg %p125
        %s187 = sand.u32 %s115, 1
        %s188 = scalar_lea.sflag [#allocation4], %s187
        %s189 = sand.u32 %s115, 1
        %s190 = smul.addr %s189, 64
        %s191 = scalar_lea.vmem [#allocation3], %s190
        %s192 = smul.u32 8, %s18
        %p193 = scmp.lt.s32.totalorder %s192, 15
        %s194 = scalar_select %p193, %s192, 15
        %s195 = smul.addr %s194, 8
        %s196 = scalar_lea.vmem %s0, %s195
        %s197 = smul.u32 8, %s18
        %s198 = smul.u32 8, %s18
        %v199 = vld [vmem:[%s196] sm:$0xff]
        %v200 = vld [vmem:[%s196 + $0x8] sm:$0xff]
        %v201 = vld [vmem:[%s196 + $0x10] sm:$0xff]
        %v202 = vld [vmem:[%s196 + $0x18] sm:$0xff]
        %v203 = vld [vmem:[%s196 + $0x20] sm:$0xff]
        %v204 = vld [vmem:[%s196 + $0x28] sm:$0xff]
        %v205 = vld [vmem:[%s196 + $0x30] sm:$0xff]
        %v206 = vld [vmem:[%s196 + $0x38] sm:$0xff]
        %v207 = vld [vmem:[%s1] sm:$0xff]
        %v208 = vadd.f32 %v199, %v207
        %v209 = vadd.f32 %v200, %v207
        %v210 = vadd.f32 %v201, %v207
        %v211 = vadd.f32 %v202, %v207
        %v212 = vadd.f32 %v203, %v207
        %v213 = vadd.f32 %v204, %v207
        %v214 = vadd.f32 %v205, %v207
        %v215 = vadd.f32 %v206, %v207
        %vm216 = vcmask 253952
        %217 = vst.msk [vmem:[#allocation2] sm:$0x1] %vm216, 0.0
        %218 = vst.msk [vmem:[#allocation2 + $0x10] sm:$0x1] %vm216, 0.0
        %219 = vst.msk [vmem:[#allocation2 + $0x20] sm:$0x1] %vm216, 0.0
        %220 = vst.msk [vmem:[#allocation2 + $0x30] sm:$0x1] %vm216, 0.0
        %221 = vst.msk [vmem:[#allocation2 + $0x40] sm:$0x1] %vm216, 0.0
        %222 = vst.msk [vmem:[#allocation2 + $0x50] sm:$0x1] %vm216, 0.0
        %223 = vst.msk [vmem:[#allocation2 + $0x60] sm:$0x1] %vm216, 0.0
        %224 = vst.msk [vmem:[#allocation2 + $0x70] sm:$0x1] %vm216, 0.0
        %225 = vst.msk [vmem:[#allocation2 + $0x9] sm:$0x1] %vm216, 0.0
        %226 = vst.msk [vmem:[#allocation2 + $0x19] sm:$0x1] %vm216, 0.0
        %227 = vst.msk [vmem:[#allocation2 + $0x29] sm:$0x1] %vm216, 0.0
        %228 = vst.msk [vmem:[#allocation2 + $0x39] sm:$0x1] %vm216, 0.0
        %229 = vst.msk [vmem:[#allocation2 + $0x49] sm:$0x1] %vm216, 0.0
        %230 = vst.msk [vmem:[#allocation2 + $0x59] sm:$0x1] %vm216, 0.0
        %231 = vst.msk [vmem:[#allocation2 + $0x69] sm:$0x1] %vm216, 0.0
        %232 = vst.msk [vmem:[#allocation2 + $0x79] sm:$0x1] %vm216, 0.0
        %vm233 = vcmask 261120
        %234 = vst.msk [vmem:[#allocation2 + $0x1] sm:$0xff] %vm233, %v208
        %235 = vst.msk [vmem:[#allocation2 + $0x11] sm:$0xff] %vm233, %v209
        %236 = vst.msk [vmem:[#allocation2 + $0x21] sm:$0xff] %vm233, %v210
        %237 = vst.msk [vmem:[#allocation2 + $0x31] sm:$0xff] %vm233, %v211
        %238 = vst.msk [vmem:[#allocation2 + $0x41] sm:$0xff] %vm233, %v212
        %239 = vst.msk [vmem:[#allocation2 + $0x51] sm:$0xff] %vm233, %v213
        %240 = vst.msk [vmem:[#allocation2 + $0x61] sm:$0xff] %vm233, %v214
        %241 = vst.msk [vmem:[#allocation2 + $0x71] sm:$0xff] %vm233, %v215
        %v242 = vld [vmem:[#allocation2] sm:$0xff]
        %v243 = vld [vmem:[#allocation2 + $0x10] sm:$0xff]
        %v244 = vld [vmem:[#allocation2 + $0x20] sm:$0xff]
        %v245 = vld [vmem:[#allocation2 + $0x30] sm:$0xff]
        %v246 = vld [vmem:[#allocation2 + $0x40] sm:$0xff]
        %v247 = vld [vmem:[#allocation2 + $0x50] sm:$0xff]
        %v248 = vld [vmem:[#allocation2 + $0x60] sm:$0xff]
        %v249 = vld [vmem:[#allocation2 + $0x70] sm:$0xff]
        %v250 = vld [vmem:[%s2] sm:$0xff]
        %v251 = vld [vmem:[%s2 + $0x18] sm:$0xff]
        %v252 = vld [vmem:[%s2 + $0x30] sm:$0xff]
        %v253 = vld [vmem:[%s2 + $0x48] sm:$0xff]
        %v254 = vld [vmem:[#allocation2 + $0x1] sm:$0xff]
        %v255 = vld [vmem:[#allocation2 + $0x11] sm:$0xff]
        %v256 = vld [vmem:[#allocation2 + $0x21] sm:$0xff]
        %v257 = vld [vmem:[#allocation2 + $0x31] sm:$0xff]
        %v258 = vld [vmem:[#allocation2 + $0x41] sm:$0xff]
        %v259 = vld [vmem:[#allocation2 + $0x51] sm:$0xff]
        %v260 = vld [vmem:[#allocation2 + $0x61] sm:$0xff]
        %v261 = vld [vmem:[#allocation2 + $0x71] sm:$0xff]
        %v262 = vld [vmem:[%s2 + $0x8] sm:$0xff]
        %v263 = vld [vmem:[%s2 + $0x20] sm:$0xff]
        %v264 = vld [vmem:[%s2 + $0x38] sm:$0xff]
        %v265 = vld [vmem:[%s2 + $0x50] sm:$0xff]
        %v267 = vsel %vm233, %v254, 0
        %v270 = vsel %vm233, %v255, 0
        %v273 = vsel %vm233, %v256, 0
        %v276 = vsel %vm233, %v257, 0
        %v279 = vsel %vm233, %v258, 0
        %v282 = vsel %vm233, %v259, 0
        %v285 = vsel %vm233, %v260, 0
        %v288 = vsel %vm233, %v261, 0
        %290 = vmatprep.subr.mxu0 0.0
        %291 = vmatpush1.msra.mxu0 %v262
        %292 = vmatprep.subr.mxu0 0.0
        %293 = vmatpush1.msra.mxu0 %v263
        %294 = vmatprep.subr.mxu0 0.0
        %295 = vmatpush1.msra.mxu0 %v264
        %296 = vmatprep.subr.mxu0 0.0
        %297 = vmatpush1.msra.mxu0 %v265
        %298 = vmatprep.subr.mxu0 0.0
        %299 = vmatpush1.msra.mxu0 0.0
        %300 = vmatprep.subr.mxu0 0.0
        %301 = vmatpush1.msra.mxu0 0.0
        %302 = vmatprep.subr.mxu0 0.0
        %303 = vmatpush1.msra.mxu0 0.0
        %304 = vmatprep.subr.mxu0 0.0
        %305 = vmatpush1.msra.mxu0 0.0
        %306 = vmatprep.subr.mxu0 0.0
        %307 = vmatpush1.msra.mxu0 0.0
        %308 = vmatprep.subr.mxu0 0.0
        %309 = vmatpush1.msra.mxu0 0.0
        %310 = vmatprep.subr.mxu0 0.0
        %311 = vmatpush1.msra.mxu0 0.0
        %312 = vmatprep.subr.mxu0 0.0
        %313 = vmatpush1.msra.mxu0 0.0
        %314 = vmatprep.subr.mxu0 0.0
        %315 = vmatpush1.msra.mxu0 0.0
        %316 = vmatprep.subr.mxu0 0.0
        %317 = vmatpush1.msra.mxu0 0.0
        %318 = vmatprep.subr.mxu0 0.0
        %319 = vmatpush1.msra.mxu0 0.0
        %320 = vmatprep.subr.mxu0 0.0
        %321 = vmatpush1.msra.mxu0 0.0
        %322 = vmatprep.subr.mxu0 0.0
        %323 = vmatpush1.msra.mxu0 0.0
        %324 = vmatprep.subr.mxu0 0.0
        %325 = vmatpush1.msra.mxu0 0.0
        %326 = vmatprep.subr.mxu0 0.0
        %327 = vmatpush1.msra.mxu0 0.0
        %328 = vmatprep.subr.mxu0 0.0
        %329 = vmatpush1.msra.mxu0 0.0
        %330 = vmatprep.subr.mxu0 0.0
        %331 = vmatpush1.msra.mxu0 0.0
        %332 = vmatprep.subr.mxu0 0.0
        %333 = vmatpush1.msra.mxu0 0.0
        %334 = vmatprep.subr.mxu0 0.0
        %335 = vmatpush1.msra.mxu0 0.0
        %336 = vmatprep.subr.mxu0 0.0
        %337 = vmatpush1.msra.mxu0 0.0
        %338 = vmatprep.subr.mxu0 0.0
        %339 = vmatpush1.msra.mxu0 0.0
        %340 = vmatprep.subr.mxu0 0.0
        %341 = vmatpush1.msra.mxu0 0.0
        %342 = vmatprep.subr.mxu0 0.0
        %343 = vmatpush1.msra.mxu0 0.0
        %344 = vmatprep.subr.mxu0 0.0
        %345 = vmatpush1.msra.mxu0 0.0
        %346 = vmatprep.subr.mxu0 0.0
        %347 = vmatpush1.msra.mxu0 0.0
        %348 = vmatprep.subr.mxu0 0.0
        %349 = vmatpush1.msra.mxu0 0.0
        %350 = vmatprep.subr.mxu0 0.0
        %351 = vmatpush1.msra.mxu0 0.0
        %352 = vmatprep.subr.mxu0 0.0
        %353 = vmatpush1.msra.mxu0 0.0
        %354 = vmatprep.mubr.f32.mxu0 0.0
        %355 = vmatmul.mubr.f32.gmra.mrb[0].mxu0 %v267
        %v356 = vpop.f32.mrb[0].mxu0
        %v357 = vadd.f32 0.0, %v356
        %v358 = vpop.f32.mrb[0].mxu0
        %359 = vmatprep.mubr.f32.mxu0 0.0
        %360 = vmatmul.mubr.f32.gmra.mrb[0].mxu0 %v270
        %v361 = vpop.f32.mrb[0].mxu0
        %v362 = vadd.f32 0.0, %v361
        %v363 = vpop.f32.mrb[0].mxu0
        %364 = vmatprep.mubr.f32.mxu0 0.0
        %365 = vmatmul.mubr.f32.gmra.mrb[0].mxu0 %v273
        %v366 = vpop.f32.mrb[0].mxu0
        %v367 = vadd.f32 0.0, %v366
        %v368 = vpop.f32.mrb[0].mxu0
        %369 = vmatprep.mubr.f32.mxu0 0.0
        %370 = vmatmul.mubr.f32.gmra.mrb[0].mxu0 %v276
        %v371 = vpop.f32.mrb[0].mxu0
        %v372 = vadd.f32 0.0, %v371
        %v373 = vpop.f32.mrb[0].mxu0
        %374 = vmatprep.mubr.f32.mxu0 0.0
        %375 = vmatmul.mubr.f32.gmra.mrb[0].mxu0 %v279
        %v376 = vpop.f32.mrb[0].mxu0
        %v377 = vadd.f32 0.0, %v376
        %v378 = vpop.f32.mrb[0].mxu0
        %379 = vmatprep.mubr.f32.mxu0 0.0
        %380 = vmatmul.mubr.f32.gmra.mrb[0].mxu0 %v282
        %v381 = vpop.f32.mrb[0].mxu0
        %v382 = vadd.f32 0.0, %v381
        %v383 = vpop.f32.mrb[0].mxu0
        %384 = vmatprep.mubr.f32.mxu0 0.0
        %385 = vmatmul.mubr.f32.gmra.mrb[0].mxu0 %v285
        %v386 = vpop.f32.mrb[0].mxu0
        %v387 = vadd.f32 0.0, %v386
        %v388 = vpop.f32.mrb[0].mxu0
        %389 = vmatprep.mubr.f32.mxu0 0.0
        %390 = vmatmul.mubr.f32.gmra.mrb[0].mxu0 %v288
        %v391 = vpop.f32.mrb[0].mxu0
        %v392 = vadd.f32 0.0, %v391
        %v393 = vpop.f32.mrb[0].mxu0
        %394 = vdwg.mxu0
        %v396 = vsel %vm233, %v242, 0
        %v399 = vsel %vm233, %v243, 0
        %v402 = vsel %vm233, %v244, 0
        %v405 = vsel %vm233, %v245, 0
        %v408 = vsel %vm233, %v246, 0
        %v411 = vsel %vm233, %v247, 0
        %v414 = vsel %vm233, %v248, 0
        %v417 = vsel %vm233, %v249, 0
        %419 = vmatprep.subr.mxu0 0.0
        %420 = vmatpush1.msra.mxu0 %v250
        %421 = vmatprep.subr.mxu0 0.0
        %422 = vmatpush1.msra.mxu0 %v251
        %423 = vmatprep.subr.mxu0 0.0
        %424 = vmatpush1.msra.mxu0 %v252
        %425 = vmatprep.subr.mxu0 0.0
        %426 = vmatpush1.msra.mxu0 %v253
        %427 = vmatprep.subr.mxu0 0.0
        %428 = vmatpush1.msra.mxu0 0.0
        %429 = vmatprep.subr.mxu0 0.0
        %430 = vmatpush1.msra.mxu0 0.0
        %431 = vmatprep.subr.mxu0 0.0
        %432 = vmatpush1.msra.mxu0 0.0
        %433 = vmatprep.subr.mxu0 0.0
        %434 = vmatpush1.msra.mxu0 0.0
        %435 = vmatprep.subr.mxu0 0.0
        %436 = vmatpush1.msra.mxu0 0.0
        %437 = vmatprep.subr.mxu0 0.0
        %438 = vmatpush1.msra.mxu0 0.0
        %439 = vmatprep.subr.mxu0 0.0
        %440 = vmatpush1.msra.mxu0 0.0
        %441 = vmatprep.subr.mxu0 0.0
        %442 = vmatpush1.msra.mxu0 0.0
        %443 = vmatprep.subr.mxu0 0.0
        %444 = vmatpush1.msra.mxu0 0.0
        %445 = vmatprep.subr.mxu0 0.0
        %446 = vmatpush1.msra.mxu0 0.0
        %447 = vmatprep.subr.mxu0 0.0
        %448 = vmatpush1.msra.mxu0 0.0
        %449 = vmatprep.subr.mxu0 0.0
        %450 = vmatpush1.msra.mxu0 0.0
        %451 = vmatprep.subr.mxu0 0.0
        %452 = vmatpush1.msra.mxu0 0.0
        %453 = vmatprep.subr.mxu0 0.0
        %454 = vmatpush1.msra.mxu0 0.0
        %455 = vmatprep.subr.mxu0 0.0
        %456 = vmatpush1.msra.mxu0 0.0
        %457 = vmatprep.subr.mxu0 0.0
        %458 = vmatpush1.msra.mxu0 0.0
        %459 = vmatprep.subr.mxu0 0.0
        %460 = vmatpush1.msra.mxu0 0.0
        %461 = vmatprep.subr.mxu0 0.0
        %462 = vmatpush1.msra.mxu0 0.0
        %463 = vmatprep.subr.mxu0 0.0
        %464 = vmatpush1.msra.mxu0 0.0
        %465 = vmatprep.subr.mxu0 0.0
        %466 = vmatpush1.msra.mxu0 0.0
        %467 = vmatprep.subr.mxu0 0.0
        %468 = vmatpush1.msra.mxu0 0.0
        %469 = vmatprep.subr.mxu0 0.0
        %470 = vmatpush1.msra.mxu0 0.0
        %471 = vmatprep.subr.mxu0 0.0
        %472 = vmatpush1.msra.mxu0 0.0
        %473 = vmatprep.subr.mxu0 0.0
        %474 = vmatpush1.msra.mxu0 0.0
        %475 = vmatprep.subr.mxu0 0.0
        %476 = vmatpush1.msra.mxu0 0.0
        %477 = vmatprep.subr.mxu0 0.0
        %478 = vmatpush1.msra.mxu0 0.0
        %479 = vmatprep.subr.mxu0 0.0
        %480 = vmatpush1.msra.mxu0 0.0
        %481 = vmatprep.subr.mxu0 0.0
        %482 = vmatpush1.msra.mxu0 0.0
        %483 = vmatprep.mubr.f32.mxu0 0.0
        %484 = vmatmul.mubr.f32.gmra.mrb[0].mxu0 %v396
        %v485 = vpop.f32.mrb[0].mxu0
        %v486 = vadd.f32 %v357, %v485
        %v487 = vpop.f32.mrb[0].mxu0
        %488 = vmatprep.mubr.f32.mxu0 0.0
        %489 = vmatmul.mubr.f32.gmra.mrb[0].mxu0 %v399
        %v490 = vpop.f32.mrb[0].mxu0
        %v491 = vadd.f32 %v362, %v490
        %v492 = vpop.f32.mrb[0].mxu0
        %493 = vmatprep.mubr.f32.mxu0 0.0
        %494 = vmatmul.mubr.f32.gmra.mrb[0].mxu0 %v402
        %v495 = vpop.f32.mrb[0].mxu0
        %v496 = vadd.f32 %v367, %v495
        %v497 = vpop.f32.mrb[0].mxu0
        %498 = vmatprep.mubr.f32.mxu0 0.0
        %499 = vmatmul.mubr.f32.gmra.mrb[0].mxu0 %v405
        %v500 = vpop.f32.mrb[0].mxu0
        %v501 = vadd.f32 %v372, %v500
        %v502 = vpop.f32.mrb[0].mxu0
        %503 = vmatprep.mubr.f32.mxu0 0.0
        %504 = vmatmul.mubr.f32.gmra.mrb[0].mxu0 %v408
        %v505 = vpop.f32.mrb[0].mxu0
        %v506 = vadd.f32 %v377, %v505
        %v507 = vpop.f32.mrb[0].mxu0
        %508 = vmatprep.mubr.f32.mxu0 0.0
        %509 = vmatmul.mubr.f32.gmra.mrb[0].mxu0 %v411
        %v510 = vpop.f32.mrb[0].mxu0
        %v511 = vadd.f32 %v382, %v510
        %v512 = vpop.f32.mrb[0].mxu0
        %513 = vmatprep.mubr.f32.mxu0 0.0
        %514 = vmatmul.mubr.f32.gmra.mrb[0].mxu0 %v414
        %v515 = vpop.f32.mrb[0].mxu0
        %v516 = vadd.f32 %v387, %v515
        %v517 = vpop.f32.mrb[0].mxu0
        %518 = vmatprep.mubr.f32.mxu0 0.0
        %519 = vmatmul.mubr.f32.gmra.mrb[0].mxu0 %v417
        %v520 = vpop.f32.mrb[0].mxu0
        %v521 = vadd.f32 %v392, %v520
        %v522 = vpop.f32.mrb[0].mxu0
        %523 = vdwg.mxu0
        %v524 = vld [vmem:[#allocation2 + $0x2] sm:$0xff]
        %v525 = vld [vmem:[#allocation2 + $0x12] sm:$0xff]
        %v526 = vld [vmem:[#allocation2 + $0x22] sm:$0xff]
        %v527 = vld [vmem:[#allocation2 + $0x32] sm:$0xff]
        %v528 = vld [vmem:[#allocation2 + $0x42] sm:$0xff]
        %v529 = vld [vmem:[#allocation2 + $0x52] sm:$0xff]
        %v530 = vld [vmem:[#allocation2 + $0x62] sm:$0xff]
        %v531 = vld [vmem:[#allocation2 + $0x72] sm:$0xff]
        %v532 = vld [vmem:[%s2 + $0x10] sm:$0xff]
        %v533 = vld [vmem:[%s2 + $0x28] sm:$0xff]
        %v534 = vld [vmem:[%s2 + $0x40] sm:$0xff]
        %v535 = vld [vmem:[%s2 + $0x58] sm:$0xff]
        %v537 = vsel %vm233, %v524, 0
        %v540 = vsel %vm233, %v525, 0
        %v543 = vsel %vm233, %v526, 0
        %v546 = vsel %vm233, %v527, 0
        %v549 = vsel %vm233, %v528, 0
        %v552 = vsel %vm233, %v529, 0
        %v555 = vsel %vm233, %v530, 0
        %v558 = vsel %vm233, %v531, 0
        %560 = vmatprep.subr.mxu0 0.0
        %561 = vmatpush1.msra.mxu0 %v532
        %562 = vmatprep.subr.mxu0 0.0
        %563 = vmatpush1.msra.mxu0 %v533
        %564 = vmatprep.subr.mxu0 0.0
        %565 = vmatpush1.msra.mxu0 %v534
        %566 = vmatprep.subr.mxu0 0.0
        %567 = vmatpush1.msra.mxu0 %v535
        %568 = vmatprep.subr.mxu0 0.0
        %569 = vmatpush1.msra.mxu0 0.0
        %570 = vmatprep.subr.mxu0 0.0
        %571 = vmatpush1.msra.mxu0 0.0
        %572 = vmatprep.subr.mxu0 0.0
        %573 = vmatpush1.msra.mxu0 0.0
        %574 = vmatprep.subr.mxu0 0.0
        %575 = vmatpush1.msra.mxu0 0.0
        %576 = vmatprep.subr.mxu0 0.0
        %577 = vmatpush1.msra.mxu0 0.0
        %578 = vmatprep.subr.mxu0 0.0
        %579 = vmatpush1.msra.mxu0 0.0
        %580 = vmatprep.subr.mxu0 0.0
        %581 = vmatpush1.msra.mxu0 0.0
        %582 = vmatprep.subr.mxu0 0.0
        %583 = vmatpush1.msra.mxu0 0.0
        %584 = vmatprep.subr.mxu0 0.0
        %585 = vmatpush1.msra.mxu0 0.0
        %586 = vmatprep.subr.mxu0 0.0
        %587 = vmatpush1.msra.mxu0 0.0
        %588 = vmatprep.subr.mxu0 0.0
        %589 = vmatpush1.msra.mxu0 0.0
        %590 = vmatprep.subr.mxu0 0.0
        %591 = vmatpush1.msra.mxu0 0.0
        %592 = vmatprep.subr.mxu0 0.0
        %593 = vmatpush1.msra.mxu0 0.0
        %594 = vmatprep.subr.mxu0 0.0
        %595 = vmatpush1.msra.mxu0 0.0
        %596 = vmatprep.subr.mxu0 0.0
        %597 = vmatpush1.msra.mxu0 0.0
        %598 = vmatprep.subr.mxu0 0.0
        %599 = vmatpush1.msra.mxu0 0.0
        %600 = vmatprep.subr.mxu0 0.0
        %601 = vmatpush1.msra.mxu0 0.0
        %602 = vmatprep.subr.mxu0 0.0
        %603 = vmatpush1.msra.mxu0 0.0
        %604 = vmatprep.subr.mxu0 0.0
        %605 = vmatpush1.msra.mxu0 0.0
        %606 = vmatprep.subr.mxu0 0.0
        %607 = vmatpush1.msra.mxu0 0.0
        %608 = vmatprep.subr.mxu0 0.0
        %609 = vmatpush1.msra.mxu0 0.0
        %610 = vmatprep.subr.mxu0 0.0
        %611 = vmatpush1.msra.mxu0 0.0
        %612 = vmatprep.subr.mxu0 0.0
        %613 = vmatpush1.msra.mxu0 0.0
        %614 = vmatprep.subr.mxu0 0.0
        %615 = vmatpush1.msra.mxu0 0.0
        %616 = vmatprep.subr.mxu0 0.0
        %617 = vmatpush1.msra.mxu0 0.0
        %618 = vmatprep.subr.mxu0 0.0
        %619 = vmatpush1.msra.mxu0 0.0
        %620 = vmatprep.subr.mxu0 0.0
        %621 = vmatpush1.msra.mxu0 0.0
        %622 = vmatprep.subr.mxu0 0.0
        %623 = vmatpush1.msra.mxu0 0.0
        %624 = vmatprep.mubr.f32.mxu0 0.0
        %625 = vmatmul.mubr.f32.gmra.mrb[0].mxu0 %v537
        %v626 = vpop.f32.mrb[0].mxu0
        %v627 = vadd.f32 0.0, %v626
        %v628 = vpop.f32.mrb[0].mxu0
        %629 = vmatprep.mubr.f32.mxu0 0.0
        %630 = vmatmul.mubr.f32.gmra.mrb[0].mxu0 %v540
        %v631 = vpop.f32.mrb[0].mxu0
        %v632 = vadd.f32 0.0, %v631
        %v633 = vpop.f32.mrb[0].mxu0
        %634 = vmatprep.mubr.f32.mxu0 0.0
        %635 = vmatmul.mubr.f32.gmra.mrb[0].mxu0 %v543
        %v636 = vpop.f32.mrb[0].mxu0
        %v637 = vadd.f32 0.0, %v636
        %v638 = vpop.f32.mrb[0].mxu0
        %639 = vmatprep.mubr.f32.mxu0 0.0
        %640 = vmatmul.mubr.f32.gmra.mrb[0].mxu0 %v546
        %v641 = vpop.f32.mrb[0].mxu0
        %v642 = vadd.f32 0.0, %v641
        %v643 = vpop.f32.mrb[0].mxu0
        %644 = vmatprep.mubr.f32.mxu0 0.0
        %645 = vmatmul.mubr.f32.gmra.mrb[0].mxu0 %v549
        %v646 = vpop.f32.mrb[0].mxu0
        %v647 = vadd.f32 0.0, %v646
        %v648 = vpop.f32.mrb[0].mxu0
        %649 = vmatprep.mubr.f32.mxu0 0.0
        %650 = vmatmul.mubr.f32.gmra.mrb[0].mxu0 %v552
        %v651 = vpop.f32.mrb[0].mxu0
        %v652 = vadd.f32 0.0, %v651
        %v653 = vpop.f32.mrb[0].mxu0
        %654 = vmatprep.mubr.f32.mxu0 0.0
        %655 = vmatmul.mubr.f32.gmra.mrb[0].mxu0 %v555
        %v656 = vpop.f32.mrb[0].mxu0
        %v657 = vadd.f32 0.0, %v656
        %v658 = vpop.f32.mrb[0].mxu0
        %659 = vmatprep.mubr.f32.mxu0 0.0
        %660 = vmatmul.mubr.f32.gmra.mrb[0].mxu0 %v558
        %v661 = vpop.f32.mrb[0].mxu0
        %v662 = vadd.f32 0.0, %v661
        %v663 = vpop.f32.mrb[0].mxu0
        %664 = vdwg.mxu0
        %v665 = vadd.f32 %v486, %v627
        %v666 = vadd.f32 %v491, %v632
        %v667 = vadd.f32 %v496, %v637
        %v668 = vadd.f32 %v501, %v642
        %v669 = vadd.f32 %v506, %v647
        %v670 = vadd.f32 %v511, %v652
        %v671 = vadd.f32 %v516, %v657
        %v672 = vadd.f32 %v521, %v662
        %v673 = vld [vmem:[%s3] sm:$0x1]
        %v675 = vlaneseq
        %v676 = vshrl.u32 %v675, 7
        %v677 = vsub.s32 0, %v676
        %v678 = vrot.slane %v673, %v677
        %v680 = vadd.f32 %v665, %v678
        %v681 = vadd.f32 %v666, %v678
        %v682 = vadd.f32 %v667, %v678
        %v683 = vadd.f32 %v668, %v678
        %v684 = vadd.f32 %v669, %v678
        %v685 = vadd.f32 %v670, %v678
        %v686 = vadd.f32 %v671, %v678
        %v687 = vadd.f32 %v672, %v678
        %688 = vst [vmem:[%s191] sm:$0xff] %v680
        %689 = vst [vmem:[%s191 + $0x8] sm:$0xff] %v681
        %690 = vst [vmem:[%s191 + $0x10] sm:$0xff] %v682
        %691 = vst [vmem:[%s191 + $0x18] sm:$0xff] %v683
        %692 = vst [vmem:[%s191 + $0x20] sm:$0xff] %v684
        %693 = vst [vmem:[%s191 + $0x28] sm:$0xff] %v685
        %694 = vst [vmem:[%s191 + $0x30] sm:$0xff] %v686
        %695 = vst [vmem:[%s191 + $0x38] sm:$0xff] %v687
        %s696 = sand.u32 %s115, 1
        %s697 = scalar_lea.sflag [#allocation4], %s696
        %s698 = sand.u32 %s115, 1
        %s699 = smul.addr %s698, 64
        %s700 = scalar_lea.vmem [#allocation3], %s699
        // Predicated region
        $region37: #{temconv_forward.1} parent=35 // pred_check
          %p701 = pneg %p125
        $region38: #{temconv_forward.1} parent=35 // pred_check_branch
          %703 = sbr.rel (%p701) target = $region40
        $region39: #{temconv_forward.1} parent=35 // pred_region
          %s704 = smul.u32 8, %s18
          %s706 = ssub.s32 1024, 1024
          %707 = vsyncadd %s697, %s706
          %s708 = smul.addr %s704, 128
          %s709 = scalar_lea.hbm %s4, %s708
          %s710 = sshll.u32 %s700, 4
          %s711 = int_to_ptr.vmem [resolvable:$true] %s710
          %716 = dma.vmem_to_hbm [thread:$0]  %s711, 1024, %s709, %s697, 128, 128, 8
        $region40: #{temconv_forward.1} parent=35 // pred_fallthru
          _
      $region36: #{temconv_forward.1} parent=5 // pred_fallthru
        _
      %p717 = scmp.le.s32.totalorder 2, %s13
      // Predicated region
      $region41: #{temconv_forward.1} parent=5 // pred_check
        %p718 = pneg %p717
      $region42: #{temconv_forward.1} parent=5 // pred_check_branch
        %720 = sbr.rel (%p718) target = $region44
      $region43: #{temconv_forward.1} parent=5 // pred_region
        %s721 = ssub.s32 %s13, 2
        // Predicated region
        $region45: #{temconv_forward.1} parent=43 // pred_check
          %p722 = pneg %p131
        $region46: #{temconv_forward.1} parent=43 // pred_check_branch
          %724 = sbr.rel (%p722) target = $region48
        $region47: #{temconv_forward.1} parent=43 // pred_region
          %s725 = sand.u32 %s116, 1
          %s726 = scalar_lea.sflag [#allocation4], %s725
          %s727 = sand.u32 %s116, 1
          %s728 = smul.addr %s727, 64
          %s729 = scalar_lea.vmem [#allocation3], %s728
          %730 = dma.done %s726, 1024
        $region48: #{temconv_forward.1} parent=43 // pred_fallthru
          _
      $region44: #{temconv_forward.1} parent=5 // pred_fallthru
        _
    $region6: #{temconv_forward.1} parent=1 // loop_footer
      %s17 = sadd.s32 1, %s13
    $region7: #{temconv_forward.1} parent=1 // loop_footer_branch
      %12 = sbr.rel target = $region3
    $region8: #{temconv_forward.1} parent=1 // loop_exit
      _
    %731 = vsyncpa [#allocation4], 1
    %s732 = scalar_lea.sflag [#allocation4], 1
    %733 = vsyncpa %s732, 1

</llo_original>
